<compile_context>
chip_gen: v5e
topology: v5e:2x2
jax: 0.10.0
libtpu: 0.0.40
codegen_flags: <defaults>
</compile_context>

<pallas_src>
import functools

import numpy as np
import jax
import jax.numpy as jnp
from jax import lax
from jax.experimental import pallas as pl
from jax.experimental.pallas import tpu as pltpu


TOKEN_RESIDENT_MAX_BYTES = 4 << 20    # token tables up to 4 MiB stay VMEM-resident
VMEM_TILE_BUDGET_BYTES = 40 << 20     # working-set budget (v7x has only 64 MiB/TC)
MAX_PREFETCH_IDS = 64 * 1024          # SMEM guard: 1-D int32[N] pads to next_pow2(4N)


# ---------------------------------------------------------------------------
# helpers shared by both kernels (run inside the kernel body)
# ---------------------------------------------------------------------------

def _onehot_rows(ids, table_ref):
    """Exact row lookup on the MXU: (tile, 1) int32 ids -> (tile, H) f32 rows."""
    tile = ids.shape[0]
    rows = table_ref.shape[0]
    onehot = (ids == lax.broadcasted_iota(jnp.int32, (tile, rows), 1))
    # Cast the (cheap) one-hot to the table dtype instead of re-casting the
    # resident table every grid step; 0/1 selection stays exact.
    return jnp.dot(onehot.astype(table_ref.dtype), table_ref[...],
                   preferred_element_type=jnp.float32)


def _layer_norm(x, gamma_ref, beta_ref, eps):
    gamma = gamma_ref[...]
    beta = beta_ref[...]
    if gamma.dtype != jnp.float32:
        gamma = gamma.astype(jnp.float32)
    if beta.dtype != jnp.float32:
        beta = beta.astype(jnp.float32)
    mean = jnp.mean(x, axis=-1, keepdims=True)
    xc = x - mean
    var = jnp.mean(xc * xc, axis=-1, keepdims=True)     # biased var, eps in rsqrt
    return xc * lax.rsqrt(var + eps) * gamma + beta


# ---------------------------------------------------------------------------
# Kernel A: large vocab -> SMEM-prefetched ids drive a double-buffered HBM gather
# ---------------------------------------------------------------------------

def _emb_ln_dma_kernel(tok_ids_ref,       # scalar prefetch: (N_pad,) int32, SMEM
                       tok_hbm,           # (V, H) token table, HBM (pl.ANY)
                       pos_ids_ref,       # (tile, 1) int32 position ids (this tile)
                       pos_table_ref,     # (P_pad, H) resident position table
                       gamma_ref,         # (1, H)
                       beta_ref,          # (1, H)
                       out_ref,           # (tile, H)
                       gather_buf,        # scratch VMEM (2, tile, H)
                       gather_sem,        # scratch DMA semaphores (2,)
                       *, eps, tile, unroll):
    i = pl.program_id(0)
    n = pl.num_programs(0)
    slot = i & 1

    def issue_gather(tile_idx, dst_slot):
        # All `tile` row copies signal the same per-slot semaphore; they are
        # waited on below with a single aggregate descriptor of matching size.
        base = pl.multiple_of(tile_idx * tile, tile)

        def body(r, carry):
            row = tok_ids_ref[base + r]
            pltpu.make_async_copy(tok_hbm.at[row],
                                  gather_buf.at[dst_slot, r],
                                  gather_sem.at[dst_slot]).start()
            return carry

        lax.fori_loop(0, tile, body, None, unroll=unroll)

    # Prime the pipeline: the very first step gathers its own tile.
    @pl.when(i == 0)
    def _():
        issue_gather(i, slot)

    # Cross-step double buffering: issue next tile's gather now so it overlaps
    # with this tile's compute + output writeback.
    @pl.when(i + 1 < n)
    def _():
        issue_gather(i + 1, 1 - slot)

    # Position lookup runs between DMA issue and the wait, so MXU/VPU work
    # hides part of the gather latency even on the primed first step.
    pos = _onehot_rows(pos_ids_ref[...], pos_table_ref)

    # Single aggregate wait: the descriptor covers the whole (tile, H) slot, so
    # its byte count equals the sum of the `tile` row copies signalled above.
    pltpu.make_async_copy(tok_hbm.at[pl.ds(0, tile)],
                          gather_buf.at[slot],
                          gather_sem.at[slot]).wait()

    tok = gather_buf[slot]
    if tok.dtype != jnp.float32:
        tok = tok.astype(jnp.float32)

    # TODO(synk): training-mode dropout (pltpu.prng_random_bits mask) not
    # implemented; eval-mode dropout is identity, matching inference semantics.
    out_ref[...] = _layer_norm(tok + pos, gamma_ref, beta_ref, eps).astype(out_ref.dtype)


# ---------------------------------------------------------------------------
# Kernel B: tiny vocab -> both tables fully VMEM-resident, no manual DMA at all
# ---------------------------------------------------------------------------

def _emb_ln_resident_kernel(tok_ids_ref,      # (tile, 1) int32
                            pos_ids_ref,      # (tile, 1) int32
                            tok_table_ref,    # (V_pad, H) resident
                            pos_table_ref,    # (P_pad, H) resident
                            gamma_ref,        # (1, H)
                            beta_ref,         # (1, H)
                            out_ref,          # (tile, H)
                            *, eps):
    tok = _onehot_rows(tok_ids_ref[...], tok_table_ref)
    pos = _onehot_rows(pos_ids_ref[...], pos_table_ref)
    # TODO(synk): training-mode dropout not implemented (eval identity).
    out_ref[...] = _layer_norm(tok + pos, gamma_ref, beta_ref, eps).astype(out_ref.dtype)


# ---------------------------------------------------------------------------
# Wrapper: dispatch, tiling, VMEM budgeting, SMEM chunking
# ---------------------------------------------------------------------------

def _round_up(x, m):
    return ((x + m - 1) // m) * m


def _pad_rows_to_8(table):
    rows = table.shape[0]
    rows_pad = _round_up(rows, 8)
    if rows_pad == rows:
        return table
    return jnp.pad(table, ((0, rows_pad - rows), (0, 0)))


def _pick_tile(n_tokens, fits_fn):
    cands = [t for t in (1024, 512, 256, 128, 64, 32, 16, 8) if fits_fn(t)]
    if not cands:
        return 8
    divisors = [t for t in cands if n_tokens % t == 0]
    if divisors:
        return divisors[0]                       # largest tile that divides N
    capped = [t for t in cands if t <= max(8, _round_up(n_tokens, 8))]
    return capped[0] if capped else 8


def _resident_call(tok_2d, pos_2d, tok_table_pad, pos_table_pad, gamma2d, beta2d,
                   *, tile, eps, out_dtype, vmem_limit):
    N_pad = tok_2d.shape[0]
    H = tok_table_pad.shape[1]
    n_tiles = N_pad // tile
    kernel = functools.partial(_emb_ln_resident_kernel, eps=eps)
    grid_spec = pltpu.PrefetchScalarGridSpec(
        num_scalar_prefetch=0,
        grid=(n_tiles,),
        in_specs=[
            pl.BlockSpec((tile, 1), lambda i: (i, 0)),            # token ids
            pl.BlockSpec((tile, 1), lambda i: (i, 0)),            # position ids
            pl.BlockSpec(tok_table_pad.shape, lambda i: (0, 0)),  # resident token table
            pl.BlockSpec(pos_table_pad.shape, lambda i: (0, 0)),  # resident pos table
            pl.BlockSpec((1, H), lambda i: (0, 0)),               # gamma
            pl.BlockSpec((1, H), lambda i: (0, 0)),               # beta
        ],
        out_specs=pl.BlockSpec((tile, H), lambda i: (i, 0)),
    )
    return pl.pallas_call(
        kernel,
        out_shape=jax.ShapeDtypeStruct((N_pad, H), out_dtype),
        grid_spec=grid_spec,
        compiler_params=pltpu.CompilerParams(
            dimension_semantics=("parallel",),      # no cross-step state: v7x-shardable
            vmem_limit_bytes=vmem_limit),
    )(tok_2d, pos_2d, tok_table_pad, pos_table_pad, gamma2d, beta2d)


def _dma_call(tok_flat, pos_flat, token_table, pos_table_pad, gamma2d, beta2d,
              *, tile, eps, out_dtype, vmem_limit):
    N_pad = tok_flat.shape[0]
    H = token_table.shape[1]
    n_tiles = N_pad // tile
    kernel = functools.partial(_emb_ln_dma_kernel, eps=eps, tile=tile,
                               unroll=min(8, tile))
    grid_spec = pltpu.PrefetchScalarGridSpec(
        num_scalar_prefetch=1,                        # token ids -> SMEM (drive DMAs)
        grid=(n_tiles,),
        in_specs=[
            pl.BlockSpec(memory_space=pl.ANY),                        # token table in HBM
            pl.BlockSpec((tile, 1), lambda i, tok: (i, 0)),           # position ids
            pl.BlockSpec(pos_table_pad.shape, lambda i, tok: (0, 0)), # resident pos table
            pl.BlockSpec((1, H), lambda i, tok: (0, 0)),              # gamma
            pl.BlockSpec((1, H), lambda i, tok: (0, 0)),              # beta
        ],
        out_specs=pl.BlockSpec((tile, H), lambda i, tok: (i, 0)),
        scratch_shapes=[
            pltpu.VMEM((2, tile, H), token_table.dtype),              # gather double buffer
            pltpu.SemaphoreType.DMA((2,)),                            # one sem per slot
        ],
    )
    return pl.pallas_call(
        kernel,
        out_shape=jax.ShapeDtypeStruct((N_pad, H), out_dtype),
        grid_spec=grid_spec,
        compiler_params=pltpu.CompilerParams(
            # "arbitrary": the gather pipeline carries state across grid steps
            # (slot parity + step-0 priming); megacore sharding would break it.
            dimension_semantics=("arbitrary",),
            vmem_limit_bytes=vmem_limit),
    )(tok_flat, token_table, pos_flat.reshape(N_pad, 1), pos_table_pad, gamma2d, beta2d)


def embeddings_forward(token_ids, position_ids, token_table, position_table,
                       gamma, beta, *, eps, out_dtype=None, force_token_dma=None):
    """Pallas forward of Embeddings (eval mode): LN(tokEmb[ids] + posEmb[pos])."""
    B, S = token_ids.shape
    V, H = token_table.shape
    P, _ = position_table.shape
    N = B * S

    # NOTE: pass out_dtype=jnp.bfloat16 to halve output HBM writeback when the
    # downstream consumer accepts bf16 activations.
    out_dtype = np.dtype(token_table.dtype if out_dtype is None else out_dtype)
    tab_itemsize = np.dtype(token_table.dtype).itemsize
    out_itemsize = out_dtype.itemsize

    # --- dispatch: tiny token tables skip the DMA gather path entirely -------
    tok_table_bytes = V * H * tab_itemsize
    if force_token_dma is None:
        tok_resident = tok_table_bytes <= TOKEN_RESIDENT_MAX_BYTES
    else:
        tok_resident = not force_token_dma
    if not tok_resident and V < 8:
        tok_resident = True                       # degenerate vocab corner case

    pos_table_pad = _pad_rows_to_8(position_table)
    tok_table_pad = _pad_rows_to_8(token_table) if tok_resident else token_table

    # --- VMEM budget -> tile size (conservative: double-count resident blocks)
    resident_bytes = 2 * (pos_table_pad.size * pos_table_pad.dtype.itemsize
                          + 2 * H * 4)
    if tok_resident:
        resident_bytes += 2 * tok_table_pad.size * tab_itemsize
    # TODO(synk): if the position table alone approaches the VMEM budget
    # (e.g. P=2048, H=8192 f32 = 64 MiB on v7x), gather its rows through the
    # same double-buffered DMA path instead of keeping it resident.

    def _per_tile_bytes(t):
        b = 2 * t * H * out_itemsize + 4 * t * 4          # out dbl-buf + id blocks
        if not tok_resident:
            b += 2 * t * H * tab_itemsize                 # gather dbl-buf
        return b

    def _fits(t):
        if not tok_resident and t > V:
            return False          # aggregate-wait descriptor slices table[:tile]
        return resident_bytes + _per_tile_bytes(t) <= VMEM_TILE_BUDGET_BYTES

    tile = _pick_tile(N, _fits)
    vmem_limit = int(min(max(resident_bytes + _per_tile_bytes(tile) + (8 << 20),
                             32 << 20), 56 << 20))

    # --- flatten + pad ids (tile chosen to divide N when possible -> no slice)
    n_tiles = pl.cdiv(N, tile)
    N_pad = n_tiles * tile
    tok_flat = jnp.clip(token_ids.reshape(N).astype(jnp.int32), 0, V - 1)
    pos_flat = jnp.clip(position_ids.reshape(N).astype(jnp.int32), 0, P - 1)
    if N_pad != N:
        tok_flat = jnp.pad(tok_flat, (0, N_pad - N))
        pos_flat = jnp.pad(pos_flat, (0, N_pad - N))

    gamma2d = gamma.reshape(1, H).astype(jnp.float32)
    beta2d = beta.reshape(1, H).astype(jnp.float32)

    if tok_resident:
        out_flat = _resident_call(tok_flat.reshape(N_pad, 1),
                                  pos_flat.reshape(N_pad, 1),
                                  tok_table_pad, pos_table_pad, gamma2d, beta2d,
                                  tile=tile, eps=eps, out_dtype=out_dtype,
                                  vmem_limit=vmem_limit)
    else:
        # SMEM guard: chunk the scalar-prefetched id vector if it would blow up
        # (1-D int32[N] pads to next_pow2(4N) bytes of SMEM).
        chunk = max((MAX_PREFETCH_IDS // tile) * tile, tile)
        if N_pad <= chunk:
            out_flat = _dma_call(tok_flat, pos_flat, token_table, pos_table_pad,
                                 gamma2d, beta2d, tile=tile, eps=eps,
                                 out_dtype=out_dtype, vmem_limit=vmem_limit)
        else:
            pieces = []
            for s in range(0, N_pad, chunk):
                e = min(s + chunk, N_pad)
                pieces.append(_dma_call(tok_flat[s:e], pos_flat[s:e], token_table,
                                        pos_table_pad, gamma2d, beta2d, tile=tile,
                                        eps=eps, out_dtype=out_dtype,
                                        vmem_limit=vmem_limit))
            out_flat = jnp.concatenate(pieces, axis=0)

    if N_pad != N:
        out_flat = out_flat[:N]
    return out_flat.reshape(B, S, H)


# ---------------------------------------------------------------------------
# Reference + demo
# ---------------------------------------------------------------------------

def _reference(token_ids, position_ids, token_table, position_table, gamma, beta, eps):
    x = token_table[token_ids] + position_table[position_ids]
    mean = jnp.mean(x, axis=-1, keepdims=True)
    var = jnp.mean((x - mean) ** 2, axis=-1, keepdims=True)
    return (x - mean) * lax.rsqrt(var + eps) * gamma + beta


if __name__ == "__main__":
    vocab_size = 32
    hidden_size = 128
    max_position_embeddings = 16
    layer_norm_eps = 1e-12
    PAD_id = 0

    key = jax.random.PRNGKey(0)
    k_tok, k_pos, k_ids1, k_ids2 = jax.random.split(key, 4)

    # deterministic synthetic parameters (nn.Embedding-style init, padding_idx
    # row zeroed; LayerNorm gamma=1, beta=0)
    token_table = 0.02 * jax.random.normal(k_tok, (vocab_size, hidden_size), jnp.float32)
    token_table = token_table.at[PAD_id].set(0.0)
    position_table = 0.02 * jax.random.normal(
        k_pos, (max_position_embeddings + 1, hidden_size), jnp.float32)
    gamma = jnp.ones((hidden_size,), jnp.float32)
    beta = jnp.zeros((hidden_size,), jnp.float32)

    # --- case 1: default dispatch (tiny vocab -> fully-resident one-hot path) ---
    B1, S1 = 2, 8
    token_ids1 = jax.random.randint(k_ids1, (B1, S1), 0, vocab_size, jnp.int32)
    position_ids1 = jnp.broadcast_to(jnp.arange(S1, dtype=jnp.int32), (B1, S1))
    out1 = jax.block_until_ready(
        embeddings_forward(token_ids1, position_ids1, token_table, position_table,
                           gamma, beta, eps=layer_norm_eps))
    ref1 = _reference(token_ids1, position_ids1, token_table, position_table,
                      gamma, beta, layer_norm_eps)
    assert out1.shape == (B1, S1, hidden_size)
    assert jnp.allclose(out1, ref1, atol=1e-5, rtol=1e-5)

    # --- case 2: force the HBM-gather path (multi-step, double-buffered DMAs) ---
    B2, S2 = 4, 16
    token_ids2 = jax.random.randint(k_ids2, (B2, S2), 0, vocab_size, jnp.int32)
    position_ids2 = jnp.broadcast_to(jnp.arange(S2, dtype=jnp.int32), (B2, S2))
    out2 = jax.block_until_ready(
        embeddings_forward(token_ids2, position_ids2, token_table, position_table,
                           gamma, beta, eps=layer_norm_eps, force_token_dma=True))
    ref2 = _reference(token_ids2, position_ids2, token_table, position_table,
                      gamma, beta, layer_norm_eps)
    assert out2.shape == (B2, S2, hidden_size)
    assert jnp.allclose(out2, ref2, atol=1e-5, rtol=1e-5)

    print("KERNEL_OK")
</pallas_src>

<mosaic_0001>
module attributes {stable_mosaic.version = 11 : i64} {
  func.func @_emb_ln_resident_kernel(%arg0: i32, %arg1: memref<16x1xi32, #tpu.memory_space<vmem>>, %arg2: memref<16x1xi32, #tpu.memory_space<vmem>>, %arg3: memref<32x128xf32, #tpu.memory_space<vmem>>, %arg4: memref<24x128xf32, #tpu.memory_space<vmem>>, %arg5: memref<1x128xf32, #tpu.memory_space<vmem>>, %arg6: memref<1x128xf32, #tpu.memory_space<vmem>>, %arg7: memref<16x128xf32, #tpu.memory_space<vmem>>) attributes {dimension_semantics = [#tpu.dimension_semantics<parallel>], iteration_bounds = array<i64: 1>, scalar_prefetch = 0 : i64, scratch_operands = 0 : i64, tpu.core_type = #tpu.core_type<tc>, window_params = [{transform_indices = @transform_0, window_bounds = array<i64: 16, 1>}, {transform_indices = @transform_1, window_bounds = array<i64: 16, 1>}, {pipeline_mode = #tpu.pipeline_mode<synchronous>, transform_indices = @transform_2, window_bounds = array<i64: 32, 128>}, {pipeline_mode = #tpu.pipeline_mode<synchronous>, transform_indices = @transform_3, window_bounds = array<i64: 24, 128>}, {pipeline_mode = #tpu.pipeline_mode<synchronous>, transform_indices = @transform_4, window_bounds = array<i64: 1, 128>}, {pipeline_mode = #tpu.pipeline_mode<synchronous>, transform_indices = @transform_5, window_bounds = array<i64: 1, 128>}, {transform_indices = @transform_6, window_bounds = array<i64: 16, 128>}]} {
    %c0 = arith.constant 0 : index
    %c0_0 = arith.constant 0 : index
    %0 = vector.load %arg1[%c0, %c0_0] : memref<16x1xi32, #tpu.memory_space<vmem>>, vector<16x1xi32>
    %1 = tpu.iota {dimensions = array<i32: 1>} : vector<16x32xi32>
    %2 = vector.broadcast %0 : vector<16x1xi32> to vector<16x32xi32>
    %3 = arith.cmpi eq, %2, %1 : vector<16x32xi32>
    %4 = arith.extui %3 : vector<16x32xi1> to vector<16x32xi32>
    %5 = arith.sitofp %4 : vector<16x32xi32> to vector<16x32xf32>
    %c0_1 = arith.constant 0 : index
    %c0_2 = arith.constant 0 : index
    %6 = vector.load %arg3[%c0_1, %c0_2] : memref<32x128xf32, #tpu.memory_space<vmem>>, vector<32x128xf32>
    %cst = arith.constant dense<0.000000e+00> : vector<16x128xf32>
    %7 = tpu.matmul %5, %6, %cst {dimension_numbers = #tpu.dot_dimension_numbers<[1], [0], [0], [1], [0, 0, 1, 1], [], []>} : vector<16x32xf32>, vector<32x128xf32>, vector<16x128xf32> -> vector<16x128xf32>
    %c0_3 = arith.constant 0 : index
    %c0_4 = arith.constant 0 : index
    %8 = vector.load %arg2[%c0_3, %c0_4] : memref<16x1xi32, #tpu.memory_space<vmem>>, vector<16x1xi32>
    %9 = tpu.iota {dimensions = array<i32: 1>} : vector<16x24xi32>
    %10 = vector.broadcast %8 : vector<16x1xi32> to vector<16x24xi32>
    %11 = arith.cmpi eq, %10, %9 : vector<16x24xi32>
    %12 = arith.extui %11 : vector<16x24xi1> to vector<16x24xi32>
    %13 = arith.sitofp %12 : vector<16x24xi32> to vector<16x24xf32>
    %c0_5 = arith.constant 0 : index
    %c0_6 = arith.constant 0 : index
    %14 = vector.load %arg4[%c0_5, %c0_6] : memref<24x128xf32, #tpu.memory_space<vmem>>, vector<24x128xf32>
    %cst_7 = arith.constant dense<0.000000e+00> : vector<16x128xf32>
    %15 = tpu.matmul %13, %14, %cst_7 {dimension_numbers = #tpu.dot_dimension_numbers<[1], [0], [0], [1], [0, 0, 1, 1], [], []>} : vector<16x24xf32>, vector<24x128xf32>, vector<16x128xf32> -> vector<16x128xf32>
    %16 = arith.addf %7, %15 : vector<16x128xf32>
    %c0_8 = arith.constant 0 : index
    %c0_9 = arith.constant 0 : index
    %17 = vector.load %arg5[%c0_8, %c0_9] : memref<1x128xf32, #tpu.memory_space<vmem>>, vector<1x128xf32>
    %c0_10 = arith.constant 0 : index
    %c0_11 = arith.constant 0 : index
    %18 = vector.load %arg6[%c0_10, %c0_11] : memref<1x128xf32, #tpu.memory_space<vmem>>, vector<1x128xf32>
    %cst_12 = arith.constant dense<0.000000e+00> : vector<16xf32>
    %19 = vector.multi_reduction <add>, %16, %cst_12 [1] : vector<16x128xf32> to vector<16xf32>
    %20 = vector.shape_cast %19 : vector<16xf32> to vector<16x1xf32>
    %cst_13 = arith.constant 1.280000e+02 : f32
    %21 = vector.broadcast %cst_13 : f32 to vector<16x1xf32>
    %22 = arith.divf %20, %21 : vector<16x1xf32>
    %23 = vector.broadcast %22 : vector<16x1xf32> to vector<16x128xf32>
    %24 = arith.subf %16, %23 : vector<16x128xf32>
    %25 = arith.mulf %24, %24 : vector<16x128xf32>
    %cst_14 = arith.constant dense<0.000000e+00> : vector<16xf32>
    %26 = vector.multi_reduction <add>, %25, %cst_14 [1] : vector<16x128xf32> to vector<16xf32>
    %27 = vector.shape_cast %26 : vector<16xf32> to vector<16x1xf32>
    %cst_15 = arith.constant 1.280000e+02 : f32
    %28 = vector.broadcast %cst_15 : f32 to vector<16x1xf32>
    %29 = arith.divf %27, %28 : vector<16x1xf32>
    %cst_16 = arith.constant 9.99999996E-13 : f32
    %30 = vector.broadcast %cst_16 : f32 to vector<16x1xf32>
    %31 = arith.addf %29, %30 : vector<16x1xf32>
    %32 = math.rsqrt %31 : vector<16x1xf32>
    %33 = vector.broadcast %32 : vector<16x1xf32> to vector<16x128xf32>
    %34 = arith.mulf %24, %33 : vector<16x128xf32>
    %35 = vector.broadcast %17 : vector<1x128xf32> to vector<16x128xf32>
    %36 = arith.mulf %34, %35 : vector<16x128xf32>
    %37 = vector.broadcast %18 : vector<1x128xf32> to vector<16x128xf32>
    %38 = arith.addf %36, %37 : vector<16x128xf32>
    %c0_17 = arith.constant 0 : index
    %c0_18 = arith.constant 0 : index
    %39 = vector.load %arg7[%c0_17, %c0_18] : memref<16x128xf32, #tpu.memory_space<vmem>>, vector<16x128xf32>
    tpu.vector_store %arg7[%c0_17, %c0_18], %38 {strides = array<i32>} : memref<16x128xf32, #tpu.memory_space<vmem>>, vector<16x128xf32>,
    return
  }
  func.func @transform_0(%arg0: i32) -> (i32, i32) {
    %c0_i32 = arith.constant 0 : i32
    %c0_i32_0 = arith.constant 0 : i32
    return %arg0, %c0_i32 : i32, i32
  }
  func.func @transform_1(%arg0: i32) -> (i32, i32) {
    %c0_i32 = arith.constant 0 : i32
    %c0_i32_0 = arith.constant 0 : i32
    return %arg0, %c0_i32 : i32, i32
  }
  func.func @transform_2(%arg0: i32) -> (i32, i32) {
    %c0_i32 = arith.constant 0 : i32
    %c0_i32_0 = arith.constant 0 : i32
    %c0_i32_1 = arith.constant 0 : i32
    return %c0_i32, %c0_i32_0 : i32, i32
  }
  func.func @transform_3(%arg0: i32) -> (i32, i32) {
    %c0_i32 = arith.constant 0 : i32
    %c0_i32_0 = arith.constant 0 : i32
    %c0_i32_1 = arith.constant 0 : i32
    return %c0_i32, %c0_i32_0 : i32, i32
  }
  func.func @transform_4(%arg0: i32) -> (i32, i32) {
    %c0_i32 = arith.constant 0 : i32
    %c0_i32_0 = arith.constant 0 : i32
    %c0_i32_1 = arith.constant 0 : i32
    return %c0_i32, %c0_i32_0 : i32, i32
  }
  func.func @transform_5(%arg0: i32) -> (i32, i32) {
    %c0_i32 = arith.constant 0 : i32
    %c0_i32_0 = arith.constant 0 : i32
    %c0_i32_1 = arith.constant 0 : i32
    return %c0_i32, %c0_i32_0 : i32, i32
  }
  func.func @transform_6(%arg0: i32) -> (i32, i32) {
    %c0_i32 = arith.constant 0 : i32
    %c0_i32_0 = arith.constant 0 : i32
    return %arg0, %c0_i32 : i32, i32
  }
}

</mosaic_0001>

<llo_original>
// kernel: tpu_custom_call.1
$region0: #{tpu_custom_call.1}
  #allocation0 [shape = 'u32[]', space=smem, size = 0x4, offset = 0x4, fixed_abs, tag = 'smem constant byte address 0x4 - core index']
  #allocation1 [shape = 'u32[72,128]{1,0:T(1,128)}', space=vmem, size = 0x9000, scoped, tag = 'internal scratch']
  %s0 = inlined_call_operand.vmem [shape: s32[16,1], index: 0, kind: input, shape index: {}]
  %s1 = inlined_call_operand.vmem [shape: s32[16,1], index: 1, kind: input, shape index: {}]
  %s2 = inlined_call_operand.vmem [shape: f32[32,128], index: 2, kind: input, shape index: {}]
  %s3 = inlined_call_operand.hbm [shape: f32[24,128], index: 3, kind: input, shape index: {}]
  %s4 = inlined_call_operand.vmem [shape: f32[1,128], index: 4, kind: input, shape index: {}]
  %s5 = inlined_call_operand.vmem [shape: f32[1,128], index: 5, kind: input, shape index: {}]
  %s6 = inlined_call_operand.hbm [shape: f32[16,128], index: 6, kind: output, shape index: {}]
  %s7 = sld [smem:[#allocation0]]
  $region38: #{tpu_custom_call.1} parent=0
    _
  %s9 = ssub.s32 1, %s7
  %s10 = scalar_select 0, %s9, %s7
  $region1: #{tpu_custom_call.1} parent=0
    #allocation2 [shape = 'u8[12288]{0}', space=vmem, size = 0x3000, scoped, tag = 'input window, operand 3, single buffered']
    #allocation3 [shape = 's32[1]{0}', space=sflag, size = 0x4, scoped, tag = 'scoped memory for tpu_custom_call.1']
    #allocation4 [shape = 's32[1]{0}', space=sflag, size = 0x4, scoped, tag = 'scoped memory for tpu_custom_call.1']
    #allocation5 [shape = 'u8[8192]{0}', space=vmem, size = 0x2000, scoped, tag = 'output window, operand 0, single buffered']
    %11 = vsyncpa [#allocation3], 0
    %12 = vsyncpa [#allocation4], 0
    // Predicated region
    $region2: #{tpu_custom_call.1} parent=1 // pred_check
      _
    $region3: #{tpu_custom_call.1} parent=1 // pred_check_branch
      %14 = sbr.rel (0) target = $region5
    $region4: #{tpu_custom_call.1} parent=1 // pred_region
      _
    $region5: #{tpu_custom_call.1} parent=1 // pred_fallthru
      _
    // Predicated region
    $region6: #{tpu_custom_call.1} parent=1 // pred_check
      _
    $region7: #{tpu_custom_call.1} parent=1 // pred_check_branch
      %16 = sbr.rel (0) target = $region9
    $region8: #{tpu_custom_call.1} parent=1 // pred_region
      _
    $region9: #{tpu_custom_call.1} parent=1 // pred_fallthru
      _
    // Predicated region
    $region10: #{tpu_custom_call.1} parent=1 // pred_check
      _
    $region11: #{tpu_custom_call.1} parent=1 // pred_check_branch
      %18 = sbr.rel (0) target = $region13
    $region12: #{tpu_custom_call.1} parent=1 // pred_region
      _
    $region13: #{tpu_custom_call.1} parent=1 // pred_fallthru
      _
    // Predicated region
    $region14: #{tpu_custom_call.1} parent=1 // pred_check
      _
    $region15: #{tpu_custom_call.1} parent=1 // pred_check_branch
      %20 = sbr.rel (0) target = $region17
    $region16: #{tpu_custom_call.1} parent=1 // pred_region
      %22 = vsyncadd [#allocation3], 0
      %s23 = sshll.u32 %s3, 4
      %s24 = int_to_ptr.hbm [resolvable:$true] %s23
      %s25 = sshll.u32 [#allocation2], 4
      %s26 = int_to_ptr.vmem [resolvable:$true] %s25
      %31 = dma.hbm_to_vmem [thread:$0]  %s24, 384, %s26, [#allocation3], 128, 128, 8
    $region17: #{tpu_custom_call.1} parent=1 // pred_fallthru
      _
    // Predicated region
    $region18: #{tpu_custom_call.1} parent=1 // pred_check
      _
    $region19: #{tpu_custom_call.1} parent=1 // pred_check_branch
      %33 = sbr.rel (0) target = $region21
    $region20: #{tpu_custom_call.1} parent=1 // pred_region
      _
    $region21: #{tpu_custom_call.1} parent=1 // pred_fallthru
      _
    // Predicated region
    $region22: #{tpu_custom_call.1} parent=1 // pred_check
      _
    $region23: #{tpu_custom_call.1} parent=1 // pred_check_branch
      %35 = sbr.rel (0) target = $region25
    $region24: #{tpu_custom_call.1} parent=1 // pred_region
      _
    $region25: #{tpu_custom_call.1} parent=1 // pred_fallthru
      _
    // Predicated region
    $region26: #{tpu_custom_call.1} parent=1 // pred_check
      _
    $region27: #{tpu_custom_call.1} parent=1 // pred_check_branch
      %37 = sbr.rel (0) target = $region29
    $region28: #{tpu_custom_call.1} parent=1 // pred_region
      %39 = dma.done [#allocation3], 384
    $region29: #{tpu_custom_call.1} parent=1 // pred_fallthru
      _
    %v40 = vld [vmem:[%s0] sm:$0xff]
    %v41 = vld [vmem:[%s0 + $0x8] sm:$0xff]
    %v42 = vlaneseq
    %v43 = vand.u32 %v42, 127
    %44 = vset.pattern.permute.xlu0 0
    %45 = vperm.xlu0 %44, %v40
    %v46 = vpop.permute.xlu0 %45
    %47 = vset.pattern.permute.xlu0 0
    %48 = vperm.xlu0 %47, %v41
    %v49 = vpop.permute.xlu0 %48
    %vm50 = vcmp.eq.s32.totalorder %v46, %v43
    %vm51 = vcmp.eq.s32.totalorder %v49, %v43
    %v52 = vsel %vm50, 1, 0
    %v53 = vsel %vm51, 1, 0
    %v54 = vcvt.s32.f32 %v52
    %v55 = vcvt.s32.f32 %v53
    %v56 = vld [vmem:[%s2] sm:$0xff]
    %v57 = vld [vmem:[%s2 + $0x8] sm:$0xff]
    %v58 = vld [vmem:[%s2 + $0x10] sm:$0xff]
    %v59 = vld [vmem:[%s2 + $0x18] sm:$0xff]
    %v60 = vld [vmem:[%s1] sm:$0xff]
    %v61 = vld [vmem:[%s1 + $0x8] sm:$0xff]
    %62 = vset.pattern.permute.xlu0 0
    %63 = vperm.xlu0 %62, %v60
    %v64 = vpop.permute.xlu0 %63
    %65 = vset.pattern.permute.xlu0 0
    %66 = vperm.xlu0 %65, %v61
    %v67 = vpop.permute.xlu0 %66
    %vm68 = vcmp.eq.s32.totalorder %v64, %v43
    %vm69 = vcmp.eq.s32.totalorder %v67, %v43
    %v70 = vsel %vm68, 1, 0
    %v71 = vsel %vm69, 1, 0
    %v72 = vcvt.s32.f32 %v70
    %v73 = vcvt.s32.f32 %v71
    %v74 = vld [vmem:[#allocation2] sm:$0xff]
    %v75 = vld [vmem:[#allocation2 + $0x8] sm:$0xff]
    %v76 = vld [vmem:[#allocation2 + $0x10] sm:$0xff]
    %vm77 = vcmask 195584
    %v79 = vsel %vm77, %v72, 0
    %v82 = vsel %vm77, %v73, 0
    %84 = vmatpush.msra.mxu0 0.0
    %85 = vmatpush.msra.mxu0 0.0
    %86 = vmatpush.msra.mxu0 0.0
    %87 = vmatpush.msra.mxu0 0.0
    %88 = vmatpush.msra.mxu0 0.0
    %89 = vmatpush.msra.mxu0 0.0
    %90 = vmatpush.msra.mxu0 0.0
    %91 = vmatpush.msra.mxu0 0.0
    %92 = vmatpush.msra.mxu0 0.0
    %93 = vmatpush.msra.mxu0 0.0
    %94 = vmatpush.msra.mxu0 0.0
    %95 = vmatpush.msra.mxu0 0.0
    %96 = vmatpush.msra.mxu0 0.0
    %97 = vmatpush.msra.mxu0 %v76
    %98 = vmatpush.msra.mxu0 %v75
    %99 = vmatpush.msra.mxu0 %v74
    %100 = vmatmul.f32.gmra.mxu0 %v79
    %v101 = vpop.f32.mrf.mxu0
    %v102 = vadd.f32 0.0, %v101
    %103 = vmatmul.f32.gmra.mxu0 %v82
    %v104 = vpop.f32.mrf.mxu0
    %v105 = vadd.f32 0.0, %v104
    %106 = vdwg.mxu0
    %vm107 = vcmask 261120
    %v109 = vsel %vm107, %v54, 0
    %v112 = vsel %vm107, %v55, 0
    %114 = vmatpush.msra.mxu0 0.0
    %115 = vmatpush.msra.mxu0 0.0
    %116 = vmatpush.msra.mxu0 0.0
    %117 = vmatpush.msra.mxu0 0.0
    %118 = vmatpush.msra.mxu0 0.0
    %119 = vmatpush.msra.mxu0 0.0
    %120 = vmatpush.msra.mxu0 0.0
    %121 = vmatpush.msra.mxu0 0.0
    %122 = vmatpush.msra.mxu0 0.0
    %123 = vmatpush.msra.mxu0 0.0
    %124 = vmatpush.msra.mxu0 0.0
    %125 = vmatpush.msra.mxu0 0.0
    %126 = vmatpush.msra.mxu0 %v59
    %127 = vmatpush.msra.mxu0 %v58
    %128 = vmatpush.msra.mxu0 %v57
    %129 = vmatpush.msra.mxu0 %v56
    %130 = vmatmul.f32.gmra.mxu0 %v109
    %v131 = vpop.f32.mrf.mxu0
    %v132 = vadd.f32 %v102, %v131
    %133 = vmatmul.f32.gmra.mxu0 %v112
    %v134 = vpop.f32.mrf.mxu0
    %v135 = vadd.f32 %v105, %v134
    %136 = vdwg.mxu0
    %v137 = vld [vmem:[%s4] sm:$0x1]
    %v138 = vld [vmem:[%s5] sm:$0x1]
    %139 = vadd.xlane.f32.xlu0 %v132
    %v140 = vpop.xlane.xlu0 %139
    %141 = vadd.xlane.f32.xlu0 %v135
    %v142 = vpop.xlane.xlu0 %141
    %v143 = vrcp.pop 128.0
    %v144 = vmul.f32 128.0, %v143
    %v145 = vsub.f32 1.0, %v144
    %v146 = vmul.f32 %v143, %v145
    %v147 = vadd.f32 %v143, %v146
    %vm148 = vweird.f32 %v143
    %v149 = vsel %vm148, %v143, %v147
    %v150 = vmul.f32 %v140, %v149
    %v151 = vmul.f32 %v142, %v149
    %v152 = vsub.f32 %v132, %v150
    %v153 = vsub.f32 %v135, %v151
    %v154 = vmul.f32 %v152, %v152
    %v155 = vmul.f32 %v153, %v153
    %156 = vadd.xlane.f32.xlu0 %v154
    %v157 = vpop.xlane.xlu0 %156
    %158 = vadd.xlane.f32.xlu0 %v155
    %v159 = vpop.xlane.xlu0 %158
    %v160 = vmul.f32 %v157, %v149
    %v161 = vmul.f32 %v159, %v149
    %v162 = vadd.f32 %v160, 1e-12
    %v163 = vadd.f32 %v161, 1e-12
    %v164 = vrsqrt.pop %v162
    %v165 = vmul.f32 %v164, %v162
    %v166 = vmul.f32 %v165, %v164
    %v167 = vmul.f32 0.5, %v166
    %v168 = vsub.f32 1.5, %v167
    %v169 = vmul.f32 %v164, %v168
    %vm170 = vweird.f32 %v162
    %vm171 = vweird.f32 %v164
    %vm172 = vmor %vm170, %vm171
    %v173 = vsel %vm172, %v164, %v169
    %v174 = vrsqrt.pop %v163
    %v175 = vmul.f32 %v174, %v163
    %v176 = vmul.f32 %v175, %v174
    %v177 = vmul.f32 0.5, %v176
    %v178 = vsub.f32 1.5, %v177
    %v179 = vmul.f32 %v174, %v178
    %vm180 = vweird.f32 %v163
    %vm181 = vweird.f32 %v174
    %vm182 = vmor %vm180, %vm181
    %v183 = vsel %vm182, %v174, %v179
    %v184 = vmul.f32 %v152, %v173
    %v185 = vmul.f32 %v153, %v183
    %v187 = vperm.slane %v137, 0
    %v189 = vmul.f32 %v184, %v187
    %v190 = vmul.f32 %v185, %v187
    %v192 = vperm.slane %v138, 0
    %v194 = vadd.f32 %v189, %v192
    %v195 = vadd.f32 %v190, %v192
    %196 = vst [vmem:[#allocation5] sm:$0xff] %v194
    %197 = vst [vmem:[#allocation5 + $0x8] sm:$0xff] %v195
    // Predicated region
    $region30: #{tpu_custom_call.1} parent=1 // pred_check
      _
    $region31: #{tpu_custom_call.1} parent=1 // pred_check_branch
      %199 = sbr.rel (0) target = $region33
    $region32: #{tpu_custom_call.1} parent=1 // pred_region
      %201 = vsyncadd [#allocation4], 0
      %s202 = sshll.u32 [#allocation5], 4
      %s203 = int_to_ptr.vmem [resolvable:$true] %s202
      %s204 = sshll.u32 %s6, 4
      %s205 = int_to_ptr.hbm [resolvable:$true] %s204
      %210 = dma.vmem_to_hbm [thread:$0]  %s203, 256, %s205, [#allocation4], 128, 128, 8
    $region33: #{tpu_custom_call.1} parent=1 // pred_fallthru
      _
    // Predicated region
    $region34: #{tpu_custom_call.1} parent=1 // pred_check
      _
    $region35: #{tpu_custom_call.1} parent=1 // pred_check_branch
      %212 = sbr.rel (0) target = $region37
    $region36: #{tpu_custom_call.1} parent=1 // pred_region
      %214 = dma.done [#allocation4], 256
    $region37: #{tpu_custom_call.1} parent=1 // pred_fallthru
      _
    %215 = vsyncpa [#allocation3], 1
    %216 = vsyncpa [#allocation4], 1

</llo_original>
